<compile_context>
chip_gen: v6e
topology: v6e:2x2x1
jax: 0.10.0
libtpu: 0.0.40
codegen_flags: <defaults>
</compile_context>

<pallas_src>
import functools

import jax
import jax.numpy as jnp
from jax.experimental import pallas as pl
from jax.experimental.pallas import tpu as pltpu


def _round_up(x: int, m: int) -> int:
    return (x + m - 1) // m * m


# ----------------------------------------------------------------------------
# Fused MLP kernel: x @ W1 -> relu -> @ W2 -> relu -> ... -> @ Wk
# ----------------------------------------------------------------------------
def _fused_mlp_kernel(*refs):
    x_ref = refs[0]
    w_refs = refs[1:-1]
    o_ref = refs[-1]

    h = x_ref[...]  # bf16 (tile_m, D0_pad)
    n_layers = len(w_refs)
    for idx, w_ref in enumerate(w_refs):
        acc = jnp.dot(h, w_ref[...], preferred_element_type=jnp.float32)
        if idx < n_layers - 1:
            # ReLU between hidden layers (dropout_p == 0.0 -> identity, skipped)
            acc = jnp.maximum(acc, 0.0)
            h = acc.astype(w_ref.dtype)  # back to bf16 for the next MXU pass
        else:
            o_ref[...] = acc.astype(o_ref.dtype)


# ----------------------------------------------------------------------------
# Parameter prep (done once, outside the jitted forward):
#   PyTorch (out,in) f32  ->  padded (in_pad, out_pad) bf16, lane-dense.
# Zero-padding is exact: padded input features are zero and padded output
# lanes stay zero through matmul+ReLU, then get sliced off at the end.
# ----------------------------------------------------------------------------
def prepare_params(torch_style_weights):
    padded = []
    for w in torch_style_weights:  # w: (out_dim, in_dim)
        out_dim, in_dim = w.shape
        in_pad = _round_up(in_dim, 128)
        out_pad = _round_up(out_dim, 128)
        wt = jnp.zeros((in_pad, out_pad), jnp.float32)
        wt = wt.at[:in_dim, :out_dim].set(jnp.transpose(w).astype(jnp.float32))
        padded.append(wt.astype(jnp.bfloat16))
    return tuple(padded)


# ----------------------------------------------------------------------------
# Forward pass
# ----------------------------------------------------------------------------
@functools.partial(jax.jit, static_argnames=("input_dim", "output_dim"))
def fcnet_forward(x, padded_weights, *, input_dim, output_dim):
    n = x.shape[0]
    x2 = x.reshape(n, -1).astype(jnp.bfloat16)  # matches x.reshape(-1, input_dim)
    assert x2.shape[1] == input_dim

    in_pad = padded_weights[0].shape[0]
    out_pad = padded_weights[-1].shape[1]

    # Row tiling: small batches run as one tile; large batches pipeline in
    # 128-row tiles sharded across TensorCores ("parallel").
    tile_m = 128 if n >= 128 else _round_up(n, 8)
    n_pad = _round_up(n, tile_m)

    xp = jnp.zeros((n_pad, in_pad), jnp.bfloat16).at[:n, :input_dim].set(x2)

    in_specs = [pl.BlockSpec((tile_m, in_pad), lambda i: (i, 0))]
    for w in padded_weights:
        # Full-array block, constant index -> weight stays resident in VMEM.
        in_specs.append(pl.BlockSpec(w.shape, lambda i: (0, 0)))

    out = pl.pallas_call(
        _fused_mlp_kernel,
        out_shape=jax.ShapeDtypeStruct((n_pad, out_pad), jnp.float32),
        grid=(n_pad // tile_m,),
        in_specs=in_specs,
        out_specs=pl.BlockSpec((tile_m, out_pad), lambda i: (i, 0)),
        compiler_params=pltpu.CompilerParams(
            dimension_semantics=("parallel",),
        ),
    )(xp, *padded_weights)

    return out[:n, :output_dim]


# ----------------------------------------------------------------------------
# Deterministic init matching PyTorch: weight.data.normal_(0.0, 0.1),
# Linear(ip_dim, op_dim, bias=False)  => weight shape (op_dim, ip_dim).
# ----------------------------------------------------------------------------
def init_fcnet_weights(key, net_config):
    weights = []
    keys = jax.random.split(key, len(net_config) - 1)
    for k, ip_dim, op_dim in zip(keys, net_config[:-1], net_config[1:]):
        weights.append(0.1 * jax.random.normal(k, (op_dim, ip_dim), jnp.float32))
    return weights


# TODO(synk): F.dropout is configured with p=0.0 (identity) in the reference,
# so stochastic dropout is intentionally not implemented in the kernel.


if __name__ == "__main__":
    # MNIST-style FcNet: net_config = [784, 256, 128, 10]
    net_config = [784, 256, 128, 10]

    key = jax.random.PRNGKey(0)
    wkey, xkey = jax.random.split(key)

    torch_weights = init_fcnet_weights(wkey, net_config)
    padded_weights = prepare_params(torch_weights)

    # batch=2, MNIST-shaped input (N, 1, 28, 28); forward reshapes to (N, 784).
    x = jax.random.normal(xkey, (2, 1, 28, 28), dtype=jnp.float32)

    logits = fcnet_forward(
        x, padded_weights, input_dim=net_config[0], output_dim=net_config[-1]
    )
    logits = jax.block_until_ready(logits)

    assert logits.shape == (2, net_config[-1]), logits.shape
    assert bool(jnp.all(jnp.isfinite(logits)))
    print("KERNEL_OK")
</pallas_src>

<mosaic_0001>
module attributes {stable_mosaic.version = 11 : i64} {
  func.func @_fused_mlp_kernel(%arg0: i32, %arg1: memref<8x896xbf16, #tpu.memory_space<vmem>>, %arg2: memref<896x256xbf16, #tpu.memory_space<vmem>>, %arg3: memref<256x128xbf16, #tpu.memory_space<vmem>>, %arg4: memref<128x128xbf16, #tpu.memory_space<vmem>>, %arg5: memref<8x128xf32, #tpu.memory_space<vmem>>) attributes {dimension_semantics = [#tpu.dimension_semantics<parallel>], iteration_bounds = array<i64: 1>, scalar_prefetch = 0 : i64, scratch_operands = 0 : i64, tpu.core_type = #tpu.core_type<tc>, window_params = [{transform_indices = @transform_0, window_bounds = array<i64: 8, 896>}, {pipeline_mode = #tpu.pipeline_mode<synchronous>, transform_indices = @transform_1, window_bounds = array<i64: 896, 256>}, {pipeline_mode = #tpu.pipeline_mode<synchronous>, transform_indices = @transform_2, window_bounds = array<i64: 256, 128>}, {pipeline_mode = #tpu.pipeline_mode<synchronous>, transform_indices = @transform_3, window_bounds = array<i64: 128, 128>}, {transform_indices = @transform_4, window_bounds = array<i64: 8, 128>}]} {
    %c0 = arith.constant 0 : index
    %c0_0 = arith.constant 0 : index
    %0 = vector.load %arg1[%c0, %c0_0] : memref<8x896xbf16, #tpu.memory_space<vmem>>, vector<8x896xbf16>
    %c0_1 = arith.constant 0 : index
    %c0_2 = arith.constant 0 : index
    %1 = vector.load %arg2[%c0_1, %c0_2] : memref<896x256xbf16, #tpu.memory_space<vmem>>, vector<896x256xbf16>
    %cst = arith.constant dense<0.000000e+00> : vector<8x256xf32>
    %2 = tpu.matmul %0, %1, %cst {dimension_numbers = #tpu.dot_dimension_numbers<[1], [0], [0], [1], [0, 0, 1, 1], [], []>} : vector<8x896xbf16>, vector<896x256xbf16>, vector<8x256xf32> -> vector<8x256xf32>
    %cst_3 = arith.constant 0.000000e+00 : f32
    %3 = vector.broadcast %cst_3 : f32 to vector<8x256xf32>
    %4 = arith.maximumf %2, %3 : vector<8x256xf32>
    %5 = arith.truncf %4 : vector<8x256xf32> to vector<8x256xbf16>
    %c0_4 = arith.constant 0 : index
    %c0_5 = arith.constant 0 : index
    %6 = vector.load %arg3[%c0_4, %c0_5] : memref<256x128xbf16, #tpu.memory_space<vmem>>, vector<256x128xbf16>
    %cst_6 = arith.constant dense<0.000000e+00> : vector<8x128xf32>
    %7 = tpu.matmul %5, %6, %cst_6 {dimension_numbers = #tpu.dot_dimension_numbers<[1], [0], [0], [1], [0, 0, 1, 1], [], []>} : vector<8x256xbf16>, vector<256x128xbf16>, vector<8x128xf32> -> vector<8x128xf32>
    %cst_7 = arith.constant 0.000000e+00 : f32
    %8 = vector.broadcast %cst_7 : f32 to vector<8x128xf32>
    %9 = arith.maximumf %7, %8 : vector<8x128xf32>
    %10 = arith.truncf %9 : vector<8x128xf32> to vector<8x128xbf16>
    %c0_8 = arith.constant 0 : index
    %c0_9 = arith.constant 0 : index
    %11 = vector.load %arg4[%c0_8, %c0_9] : memref<128x128xbf16, #tpu.memory_space<vmem>>, vector<128x128xbf16>
    %cst_10 = arith.constant dense<0.000000e+00> : vector<8x128xf32>
    %12 = tpu.matmul %10, %11, %cst_10 {dimension_numbers = #tpu.dot_dimension_numbers<[1], [0], [0], [1], [0, 0, 1, 1], [], []>} : vector<8x128xbf16>, vector<128x128xbf16>, vector<8x128xf32> -> vector<8x128xf32>
    %c0_11 = arith.constant 0 : index
    %c0_12 = arith.constant 0 : index
    %13 = vector.load %arg5[%c0_11, %c0_12] : memref<8x128xf32, #tpu.memory_space<vmem>>, vector<8x128xf32>
    tpu.vector_store %arg5[%c0_11, %c0_12], %12 {strides = array<i32>} : memref<8x128xf32, #tpu.memory_space<vmem>>, vector<8x128xf32>,
    return
  }
  func.func @transform_0(%arg0: i32) -> (i32, i32) {
    %c0_i32 = arith.constant 0 : i32
    %c0_i32_0 = arith.constant 0 : i32
    return %arg0, %c0_i32 : i32, i32
  }
  func.func @transform_1(%arg0: i32) -> (i32, i32) {
    %c0_i32 = arith.constant 0 : i32
    %c0_i32_0 = arith.constant 0 : i32
    %c0_i32_1 = arith.constant 0 : i32
    return %c0_i32, %c0_i32_0 : i32, i32
  }
  func.func @transform_2(%arg0: i32) -> (i32, i32) {
    %c0_i32 = arith.constant 0 : i32
    %c0_i32_0 = arith.constant 0 : i32
    %c0_i32_1 = arith.constant 0 : i32
    return %c0_i32, %c0_i32_0 : i32, i32
  }
  func.func @transform_3(%arg0: i32) -> (i32, i32) {
    %c0_i32 = arith.constant 0 : i32
    %c0_i32_0 = arith.constant 0 : i32
    %c0_i32_1 = arith.constant 0 : i32
    return %c0_i32, %c0_i32_0 : i32, i32
  }
  func.func @transform_4(%arg0: i32) -> (i32, i32) {
    %c0_i32 = arith.constant 0 : i32
    %c0_i32_0 = arith.constant 0 : i32
    return %arg0, %c0_i32 : i32, i32
  }
}

</mosaic_0001>

<llo_original>
// kernel: fcnet_forward.1
$region0: #{fcnet_forward.1}
  #allocation0 [shape = 'u32[]', space=smem, size = 0x4, offset = 0x4, fixed_abs, tag = 'smem constant byte address 0x4 - core index']
  #allocation1 [shape = 'u32[144,128]{1,0:T(1,128)}', space=vmem, size = 0x12000, scoped, tag = 'internal scratch']
  %s0 = inlined_call_operand.vmem [shape: bf16[8,896], index: 0, kind: input, shape index: {}]
  %s1 = inlined_call_operand.hbm [shape: bf16[896,256], index: 1, kind: input, shape index: {}]
  %s2 = inlined_call_operand.vmem [shape: bf16[256,128], index: 2, kind: input, shape index: {}]
  %s3 = inlined_call_operand.hbm [shape: bf16[128,128], index: 3, kind: input, shape index: {}]
  %s4 = inlined_call_operand.vmem [shape: f32[8,128], index: 4, kind: output, shape index: {}]
  %s5 = sld [smem:[#allocation0]]
  $region34: #{fcnet_forward.1} parent=0
    _
  %s7 = ssub.s32 1, %s5
  %s8 = scalar_select 0, %s7, %s5
  $region1: #{fcnet_forward.1} parent=0
    #allocation2 [shape = 'u8[458752]{0}', space=vmem, size = 0x70000, scoped, tag = 'input window, operand 1, single buffered']
    #allocation3 [shape = 's32[1]{0}', space=sflag, size = 0x4, scoped, tag = 'scoped memory for fcnet_forward.1']
    #allocation4 [shape = 'u8[32768]{0}', space=vmem, size = 0x8000, scoped, tag = 'input window, operand 3, single buffered']
    #allocation5 [shape = 's32[1]{0}', space=sflag, size = 0x4, scoped, tag = 'scoped memory for fcnet_forward.1']
    %9 = vsyncpa [#allocation3], 0
    %10 = vsyncpa [#allocation5], 0
    // Predicated region
    $region2: #{fcnet_forward.1} parent=1 // pred_check
      _
    $region3: #{fcnet_forward.1} parent=1 // pred_check_branch
      %12 = sbr.rel (0) target = $region5
    $region4: #{fcnet_forward.1} parent=1 // pred_region
      _
    $region5: #{fcnet_forward.1} parent=1 // pred_fallthru
      _
    // Predicated region
    $region6: #{fcnet_forward.1} parent=1 // pred_check
      _
    $region7: #{fcnet_forward.1} parent=1 // pred_check_branch
      %14 = sbr.rel (0) target = $region9
    $region8: #{fcnet_forward.1} parent=1 // pred_region
      %s16 = ssub.s32 14336, 14336
      %17 = vsyncadd [#allocation3], %s16
      %s18 = sshll.u32 [#allocation2], 4
      %s19 = int_to_ptr.vmem [resolvable:$true] %s18
      %24 = dma.hbm_to_vmem [thread:$0]  %s1, 14336, %s19, [#allocation3], 128, 128, 8
    $region9: #{fcnet_forward.1} parent=1 // pred_fallthru
      _
    // Predicated region
    $region10: #{fcnet_forward.1} parent=1 // pred_check
      _
    $region11: #{fcnet_forward.1} parent=1 // pred_check_branch
      %26 = sbr.rel (0) target = $region13
    $region12: #{fcnet_forward.1} parent=1 // pred_region
      _
    $region13: #{fcnet_forward.1} parent=1 // pred_fallthru
      _
    // Predicated region
    $region14: #{fcnet_forward.1} parent=1 // pred_check
      _
    $region15: #{fcnet_forward.1} parent=1 // pred_check_branch
      %28 = sbr.rel (0) target = $region17
    $region16: #{fcnet_forward.1} parent=1 // pred_region
      %s30 = ssub.s32 1024, 1024
      %31 = vsyncadd [#allocation5], %s30
      %s32 = sshll.u32 [#allocation4], 4
      %s33 = int_to_ptr.vmem [resolvable:$true] %s32
      %38 = dma.hbm_to_vmem [thread:$0]  %s3, 1024, %s33, [#allocation5], 64, 64, 4
    $region17: #{fcnet_forward.1} parent=1 // pred_fallthru
      _
    // Predicated region
    $region18: #{fcnet_forward.1} parent=1 // pred_check
      _
    $region19: #{fcnet_forward.1} parent=1 // pred_check_branch
      %40 = sbr.rel (0) target = $region21
    $region20: #{fcnet_forward.1} parent=1 // pred_region
      %41 = dma.done [#allocation3], 14336
    $region21: #{fcnet_forward.1} parent=1 // pred_fallthru
      _
    // Predicated region
    $region22: #{fcnet_forward.1} parent=1 // pred_check
      _
    $region23: #{fcnet_forward.1} parent=1 // pred_check_branch
      %43 = sbr.rel (0) target = $region25
    $region24: #{fcnet_forward.1} parent=1 // pred_region
      %44 = dma.done [#allocation5], 1024
    $region25: #{fcnet_forward.1} parent=1 // pred_fallthru
      _
    %v46 = vld [vmem:[%s0] sm:$0xff]
    %v47 = vld [vmem:[%s0 + $0x8] sm:$0xff]
    %v48 = vld [vmem:[%s0 + $0x10] sm:$0xff]
    %v49 = vld [vmem:[%s0 + $0x18] sm:$0xf]
    %v50 = vld [vmem:[#allocation2] sm:$0xff]
    %v51 = vld [vmem:[#allocation2 + $0x8] sm:$0xff]
    %v52 = vld [vmem:[#allocation2 + $0x10] sm:$0xff]
    %v53 = vld [vmem:[#allocation2 + $0x18] sm:$0xff]
    %v54 = vld [vmem:[#allocation2 + $0x20] sm:$0xff]
    %v55 = vld [vmem:[#allocation2 + $0x28] sm:$0xff]
    %v56 = vld [vmem:[#allocation2 + $0x30] sm:$0xff]
    %v57 = vld [vmem:[#allocation2 + $0x38] sm:$0xff]
    %v58 = vld [vmem:[#allocation2 + $0x40] sm:$0xff]
    %v59 = vld [vmem:[#allocation2 + $0x48] sm:$0xff]
    %v60 = vld [vmem:[#allocation2 + $0x50] sm:$0xff]
    %v61 = vld [vmem:[#allocation2 + $0x58] sm:$0xff]
    %v62 = vld [vmem:[#allocation2 + $0x60] sm:$0xff]
    %v63 = vld [vmem:[#allocation2 + $0x68] sm:$0xff]
    %v64 = vld [vmem:[#allocation2 + $0x70] sm:$0xff]
    %v65 = vld [vmem:[#allocation2 + $0x78] sm:$0xff]
    %v66 = vld [vmem:[#allocation2 + $0x80] sm:$0xff]
    %v67 = vld [vmem:[#allocation2 + $0x88] sm:$0xff]
    %v68 = vld [vmem:[#allocation2 + $0x90] sm:$0xff]
    %v69 = vld [vmem:[#allocation2 + $0x98] sm:$0xff]
    %v70 = vld [vmem:[#allocation2 + $0xa0] sm:$0xff]
    %v71 = vld [vmem:[#allocation2 + $0xa8] sm:$0xff]
    %v72 = vld [vmem:[#allocation2 + $0xb0] sm:$0xff]
    %v73 = vld [vmem:[#allocation2 + $0xb8] sm:$0xff]
    %v74 = vld [vmem:[#allocation2 + $0xc0] sm:$0xff]
    %v75 = vld [vmem:[#allocation2 + $0xc8] sm:$0xff]
    %v76 = vld [vmem:[#allocation2 + $0xd0] sm:$0xff]
    %v77 = vld [vmem:[#allocation2 + $0xd8] sm:$0xff]
    %v78 = vld [vmem:[#allocation2 + $0xe0] sm:$0xff]
    %v79 = vld [vmem:[#allocation2 + $0xe8] sm:$0xff]
    %v80 = vld [vmem:[#allocation2 + $0xf0] sm:$0xff]
    %v81 = vld [vmem:[#allocation2 + $0xf8] sm:$0xff]
    %v82 = vld [vmem:[#allocation2 + $0x100] sm:$0xff]
    %v83 = vld [vmem:[#allocation2 + $0x108] sm:$0xff]
    %v84 = vld [vmem:[#allocation2 + $0x110] sm:$0xff]
    %v85 = vld [vmem:[#allocation2 + $0x118] sm:$0xff]
    %v86 = vld [vmem:[#allocation2 + $0x120] sm:$0xff]
    %v87 = vld [vmem:[#allocation2 + $0x128] sm:$0xff]
    %v88 = vld [vmem:[#allocation2 + $0x130] sm:$0xff]
    %v89 = vld [vmem:[#allocation2 + $0x138] sm:$0xff]
    %v90 = vld [vmem:[#allocation2 + $0x140] sm:$0xff]
    %v91 = vld [vmem:[#allocation2 + $0x148] sm:$0xff]
    %v92 = vld [vmem:[#allocation2 + $0x150] sm:$0xff]
    %v93 = vld [vmem:[#allocation2 + $0x158] sm:$0xff]
    %v94 = vld [vmem:[#allocation2 + $0x160] sm:$0xff]
    %v95 = vld [vmem:[#allocation2 + $0x168] sm:$0xff]
    %v96 = vld [vmem:[#allocation2 + $0x170] sm:$0xff]
    %v97 = vld [vmem:[#allocation2 + $0x178] sm:$0xff]
    %v98 = vld [vmem:[#allocation2 + $0x180] sm:$0xff]
    %v99 = vld [vmem:[#allocation2 + $0x188] sm:$0xff]
    %v100 = vld [vmem:[#allocation2 + $0x190] sm:$0xff]
    %v101 = vld [vmem:[#allocation2 + $0x198] sm:$0xff]
    %v102 = vld [vmem:[#allocation2 + $0x1a0] sm:$0xff]
    %v103 = vld [vmem:[#allocation2 + $0x1a8] sm:$0xff]
    %v104 = vld [vmem:[#allocation2 + $0x1b0] sm:$0xff]
    %v105 = vld [vmem:[#allocation2 + $0x1b8] sm:$0xff]
    %v106 = vld [vmem:[#allocation2 + $0x1c0] sm:$0xff]
    %v107 = vld [vmem:[#allocation2 + $0x1c8] sm:$0xff]
    %v108 = vld [vmem:[#allocation2 + $0x1d0] sm:$0xff]
    %v109 = vld [vmem:[#allocation2 + $0x1d8] sm:$0xff]
    %v110 = vld [vmem:[#allocation2 + $0x1e0] sm:$0xff]
    %v111 = vld [vmem:[#allocation2 + $0x1e8] sm:$0xff]
    %v112 = vld [vmem:[#allocation2 + $0x1f0] sm:$0xff]
    %v113 = vld [vmem:[#allocation2 + $0x1f8] sm:$0xff]
    %v114 = vld [vmem:[#allocation2 + $0x200] sm:$0xff]
    %v115 = vld [vmem:[#allocation2 + $0x208] sm:$0xff]
    %v116 = vld [vmem:[#allocation2 + $0x210] sm:$0xff]
    %v117 = vld [vmem:[#allocation2 + $0x218] sm:$0xff]
    %v118 = vld [vmem:[#allocation2 + $0x220] sm:$0xff]
    %v119 = vld [vmem:[#allocation2 + $0x228] sm:$0xff]
    %v120 = vld [vmem:[#allocation2 + $0x230] sm:$0xff]
    %v121 = vld [vmem:[#allocation2 + $0x238] sm:$0xff]
    %v122 = vld [vmem:[#allocation2 + $0x240] sm:$0xff]
    %v123 = vld [vmem:[#allocation2 + $0x248] sm:$0xff]
    %v124 = vld [vmem:[#allocation2 + $0x250] sm:$0xff]
    %v125 = vld [vmem:[#allocation2 + $0x258] sm:$0xff]
    %v126 = vld [vmem:[#allocation2 + $0x260] sm:$0xff]
    %v127 = vld [vmem:[#allocation2 + $0x268] sm:$0xff]
    %v128 = vld [vmem:[#allocation2 + $0x270] sm:$0xff]
    %v129 = vld [vmem:[#allocation2 + $0x278] sm:$0xff]
    %v130 = vld [vmem:[#allocation2 + $0x280] sm:$0xff]
    %v131 = vld [vmem:[#allocation2 + $0x288] sm:$0xff]
    %v132 = vld [vmem:[#allocation2 + $0x290] sm:$0xff]
    %v133 = vld [vmem:[#allocation2 + $0x298] sm:$0xff]
    %v134 = vld [vmem:[#allocation2 + $0x2a0] sm:$0xff]
    %v135 = vld [vmem:[#allocation2 + $0x2a8] sm:$0xff]
    %v136 = vld [vmem:[#allocation2 + $0x2b0] sm:$0xff]
    %v137 = vld [vmem:[#allocation2 + $0x2b8] sm:$0xff]
    %v138 = vld [vmem:[#allocation2 + $0x2c0] sm:$0xff]
    %v139 = vld [vmem:[#allocation2 + $0x2c8] sm:$0xff]
    %v140 = vld [vmem:[#allocation2 + $0x2d0] sm:$0xff]
    %v141 = vld [vmem:[#allocation2 + $0x2d8] sm:$0xff]
    %v142 = vld [vmem:[#allocation2 + $0x2e0] sm:$0xff]
    %v143 = vld [vmem:[#allocation2 + $0x2e8] sm:$0xff]
    %v144 = vld [vmem:[#allocation2 + $0x2f0] sm:$0xff]
    %v145 = vld [vmem:[#allocation2 + $0x2f8] sm:$0xff]
    %v146 = vld [vmem:[#allocation2 + $0x300] sm:$0xff]
    %v147 = vld [vmem:[#allocation2 + $0x308] sm:$0xff]
    %v148 = vld [vmem:[#allocation2 + $0x310] sm:$0xff]
    %v149 = vld [vmem:[#allocation2 + $0x318] sm:$0xff]
    %v150 = vld [vmem:[#allocation2 + $0x320] sm:$0xff]
    %v151 = vld [vmem:[#allocation2 + $0x328] sm:$0xff]
    %v152 = vld [vmem:[#allocation2 + $0x330] sm:$0xff]
    %v153 = vld [vmem:[#allocation2 + $0x338] sm:$0xff]
    %v154 = vld [vmem:[#allocation2 + $0x340] sm:$0xff]
    %v155 = vld [vmem:[#allocation2 + $0x348] sm:$0xff]
    %v156 = vld [vmem:[#allocation2 + $0x350] sm:$0xff]
    %v157 = vld [vmem:[#allocation2 + $0x358] sm:$0xff]
    %v158 = vld [vmem:[#allocation2 + $0x360] sm:$0xff]
    %v159 = vld [vmem:[#allocation2 + $0x368] sm:$0xff]
    %v160 = vld [vmem:[#allocation2 + $0x370] sm:$0xff]
    %v161 = vld [vmem:[#allocation2 + $0x378] sm:$0xff]
    %v166 = vunpack.c.l.b16 %v46
    %v167 = vunpack.c.h.b16 %v46
    %v168 = vunpack.c.l.b16 %v47
    %v169 = vunpack.c.h.b16 %v47
    %v170 = vunpack.c.l.b16 %v48
    %v171 = vunpack.c.h.b16 %v48
    %v172 = vunpack.c.l.b16 %v49
    %v173 = vpack.c.b16 %v166, %v166
    %v174 = vpack.c.b16 %v167, %v167
    %v175 = vpack.c.b16 %v168, %v168
    %v176 = vpack.c.b16 %v169, %v169
    %v177 = vpack.c.b16 %v170, %v170
    %v178 = vpack.c.b16 %v171, %v171
    %v179 = vpack.c.b16 %v172, %v172
    %v299 = vunpack.c.l.b16 %v50
    %v300 = vunpack.c.h.b16 %v50
    %v301 = vunpack.c.l.b16 %v51
    %v302 = vunpack.c.h.b16 %v51
    %v303 = vunpack.c.l.b16 %v52
    %v304 = vunpack.c.h.b16 %v52
    %v305 = vunpack.c.l.b16 %v53
    %v306 = vunpack.c.h.b16 %v53
    %v307 = vunpack.c.l.b16 %v54
    %v308 = vunpack.c.h.b16 %v54
    %v309 = vunpack.c.l.b16 %v55
    %v310 = vunpack.c.h.b16 %v55
    %v311 = vunpack.c.l.b16 %v56
    %v312 = vunpack.c.h.b16 %v56
    %v313 = vunpack.c.l.b16 %v57
    %v314 = vunpack.c.h.b16 %v57
    %v315 = vunpack.c.l.b16 %v58
    %v316 = vunpack.c.h.b16 %v58
    %v317 = vunpack.c.l.b16 %v59
    %v318 = vunpack.c.h.b16 %v59
    %v319 = vunpack.c.l.b16 %v60
    %v320 = vunpack.c.h.b16 %v60
    %v321 = vunpack.c.l.b16 %v61
    %v322 = vunpack.c.h.b16 %v61
    %v323 = vunpack.c.l.b16 %v62
    %v324 = vunpack.c.h.b16 %v62
    %v325 = vunpack.c.l.b16 %v63
    %v326 = vunpack.c.h.b16 %v63
    %v327 = vunpack.c.l.b16 %v64
    %v328 = vunpack.c.h.b16 %v64
    %v329 = vunpack.c.l.b16 %v65
    %v330 = vunpack.c.h.b16 %v65
    %v331 = vunpack.c.l.b16 %v66
    %v332 = vunpack.c.h.b16 %v66
    %v333 = vunpack.c.l.b16 %v67
    %v334 = vunpack.c.h.b16 %v67
    %v335 = vunpack.c.l.b16 %v68
    %v336 = vunpack.c.h.b16 %v68
    %v337 = vunpack.c.l.b16 %v69
    %v338 = vunpack.c.h.b16 %v69
    %v339 = vunpack.c.l.b16 %v70
    %v340 = vunpack.c.h.b16 %v70
    %v341 = vunpack.c.l.b16 %v71
    %v342 = vunpack.c.h.b16 %v71
    %v343 = vunpack.c.l.b16 %v72
    %v344 = vunpack.c.h.b16 %v72
    %v345 = vunpack.c.l.b16 %v73
    %v346 = vunpack.c.h.b16 %v73
    %v347 = vunpack.c.l.b16 %v74
    %v348 = vunpack.c.h.b16 %v74
    %v349 = vunpack.c.l.b16 %v75
    %v350 = vunpack.c.h.b16 %v75
    %v351 = vunpack.c.l.b16 %v76
    %v352 = vunpack.c.h.b16 %v76
    %v353 = vunpack.c.l.b16 %v77
    %v354 = vunpack.c.h.b16 %v77
    %v355 = vunpack.c.l.b16 %v78
    %v356 = vunpack.c.h.b16 %v78
    %v357 = vunpack.c.l.b16 %v79
    %v358 = vunpack.c.h.b16 %v79
    %v359 = vunpack.c.l.b16 %v80
    %v360 = vunpack.c.h.b16 %v80
    %v361 = vunpack.c.l.b16 %v81
    %v362 = vunpack.c.h.b16 %v81
    %v363 = vunpack.c.l.b16 %v82
    %v364 = vunpack.c.h.b16 %v82
    %v365 = vunpack.c.l.b16 %v83
    %v366 = vunpack.c.h.b16 %v83
    %v367 = vunpack.c.l.b16 %v84
    %v368 = vunpack.c.h.b16 %v84
    %v369 = vunpack.c.l.b16 %v85
    %v370 = vunpack.c.h.b16 %v85
    %v371 = vunpack.c.l.b16 %v86
    %v372 = vunpack.c.h.b16 %v86
    %v373 = vunpack.c.l.b16 %v87
    %v374 = vunpack.c.h.b16 %v87
    %v375 = vunpack.c.l.b16 %v88
    %v376 = vunpack.c.h.b16 %v88
    %v377 = vunpack.c.l.b16 %v89
    %v378 = vunpack.c.h.b16 %v89
    %v379 = vunpack.c.l.b16 %v90
    %v380 = vunpack.c.h.b16 %v90
    %v381 = vunpack.c.l.b16 %v91
    %v382 = vunpack.c.h.b16 %v91
    %v383 = vunpack.c.l.b16 %v92
    %v384 = vunpack.c.h.b16 %v92
    %v385 = vunpack.c.l.b16 %v93
    %v386 = vunpack.c.h.b16 %v93
    %v387 = vunpack.c.l.b16 %v94
    %v388 = vunpack.c.h.b16 %v94
    %v389 = vunpack.c.l.b16 %v95
    %v390 = vunpack.c.h.b16 %v95
    %v391 = vunpack.c.l.b16 %v96
    %v392 = vunpack.c.h.b16 %v96
    %v393 = vunpack.c.l.b16 %v97
    %v394 = vunpack.c.h.b16 %v97
    %v395 = vunpack.c.l.b16 %v98
    %v396 = vunpack.c.h.b16 %v98
    %v397 = vunpack.c.l.b16 %v99
    %v398 = vunpack.c.h.b16 %v99
    %v399 = vunpack.c.l.b16 %v100
    %v400 = vunpack.c.h.b16 %v100
    %v401 = vunpack.c.l.b16 %v101
    %v402 = vunpack.c.h.b16 %v101
    %v403 = vunpack.c.l.b16 %v102
    %v404 = vunpack.c.h.b16 %v102
    %v405 = vunpack.c.l.b16 %v103
    %v406 = vunpack.c.h.b16 %v103
    %v407 = vunpack.c.l.b16 %v104
    %v408 = vunpack.c.h.b16 %v104
    %v409 = vunpack.c.l.b16 %v105
    %v410 = vunpack.c.h.b16 %v105
    %v411 = vunpack.c.l.b16 %v106
    %v412 = vunpack.c.h.b16 %v106
    %v413 = vunpack.c.l.b16 %v107
    %v414 = vunpack.c.h.b16 %v107
    %v415 = vunpack.c.l.b16 %v108
    %v416 = vunpack.c.h.b16 %v108
    %v417 = vunpack.c.l.b16 %v109
    %v418 = vunpack.c.h.b16 %v109
    %v419 = vunpack.c.l.b16 %v110
    %v420 = vunpack.c.h.b16 %v110
    %v421 = vunpack.c.l.b16 %v111
    %v422 = vunpack.c.h.b16 %v111
    %v423 = vunpack.c.l.b16 %v112
    %v424 = vunpack.c.h.b16 %v112
    %v425 = vunpack.c.l.b16 %v113
    %v426 = vunpack.c.h.b16 %v113
    %v427 = vunpack.c.l.b16 %v114
    %v428 = vunpack.c.h.b16 %v114
    %v429 = vunpack.c.l.b16 %v115
    %v430 = vunpack.c.h.b16 %v115
    %v431 = vunpack.c.l.b16 %v116
    %v432 = vunpack.c.h.b16 %v116
    %v433 = vunpack.c.l.b16 %v117
    %v434 = vunpack.c.h.b16 %v117
    %v435 = vunpack.c.l.b16 %v118
    %v436 = vunpack.c.h.b16 %v118
    %v437 = vunpack.c.l.b16 %v119
    %v438 = vunpack.c.h.b16 %v119
    %v439 = vunpack.c.l.b16 %v120
    %v440 = vunpack.c.h.b16 %v120
    %v441 = vunpack.c.l.b16 %v121
    %v442 = vunpack.c.h.b16 %v121
    %v443 = vunpack.c.l.b16 %v122
    %v444 = vunpack.c.h.b16 %v122
    %v445 = vunpack.c.l.b16 %v123
    %v446 = vunpack.c.h.b16 %v123
    %v447 = vunpack.c.l.b16 %v124
    %v448 = vunpack.c.h.b16 %v124
    %v449 = vunpack.c.l.b16 %v125
    %v450 = vunpack.c.h.b16 %v125
    %v451 = vunpack.c.l.b16 %v126
    %v452 = vunpack.c.h.b16 %v126
    %v453 = vunpack.c.l.b16 %v127
    %v454 = vunpack.c.h.b16 %v127
    %v455 = vunpack.c.l.b16 %v128
    %v456 = vunpack.c.h.b16 %v128
    %v457 = vunpack.c.l.b16 %v129
    %v458 = vunpack.c.h.b16 %v129
    %v459 = vunpack.c.l.b16 %v130
    %v460 = vunpack.c.h.b16 %v130
    %v461 = vunpack.c.l.b16 %v131
    %v462 = vunpack.c.h.b16 %v131
    %v463 = vunpack.c.l.b16 %v132
    %v464 = vunpack.c.h.b16 %v132
    %v465 = vunpack.c.l.b16 %v133
    %v466 = vunpack.c.h.b16 %v133
    %v467 = vunpack.c.l.b16 %v134
    %v468 = vunpack.c.h.b16 %v134
    %v469 = vunpack.c.l.b16 %v135
    %v470 = vunpack.c.h.b16 %v135
    %v471 = vunpack.c.l.b16 %v136
    %v472 = vunpack.c.h.b16 %v136
    %v473 = vunpack.c.l.b16 %v137
    %v474 = vunpack.c.h.b16 %v137
    %v475 = vunpack.c.l.b16 %v138
    %v476 = vunpack.c.h.b16 %v138
    %v477 = vunpack.c.l.b16 %v139
    %v478 = vunpack.c.h.b16 %v139
    %v479 = vunpack.c.l.b16 %v140
    %v480 = vunpack.c.h.b16 %v140
    %v481 = vunpack.c.l.b16 %v141
    %v482 = vunpack.c.h.b16 %v141
    %v483 = vunpack.c.l.b16 %v142
    %v484 = vunpack.c.h.b16 %v142
    %v485 = vunpack.c.l.b16 %v143
    %v486 = vunpack.c.h.b16 %v143
    %v487 = vunpack.c.l.b16 %v144
    %v488 = vunpack.c.h.b16 %v144
    %v489 = vunpack.c.l.b16 %v145
    %v490 = vunpack.c.h.b16 %v145
    %v491 = vunpack.c.l.b16 %v146
    %v492 = vunpack.c.h.b16 %v146
    %v493 = vunpack.c.l.b16 %v147
    %v494 = vunpack.c.h.b16 %v147
    %v495 = vunpack.c.l.b16 %v148
    %v496 = vunpack.c.h.b16 %v148
    %v497 = vunpack.c.l.b16 %v149
    %v498 = vunpack.c.h.b16 %v149
    %v499 = vunpack.c.l.b16 %v150
    %v500 = vunpack.c.h.b16 %v150
    %v501 = vunpack.c.l.b16 %v151
    %v502 = vunpack.c.h.b16 %v151
    %v503 = vunpack.c.l.b16 %v152
    %v504 = vunpack.c.h.b16 %v152
    %v505 = vunpack.c.l.b16 %v153
    %v506 = vunpack.c.h.b16 %v153
    %v507 = vunpack.c.l.b16 %v154
    %v508 = vunpack.c.h.b16 %v154
    %v509 = vunpack.c.l.b16 %v155
    %v510 = vunpack.c.h.b16 %v155
    %v511 = vunpack.c.l.b16 %v156
    %v512 = vunpack.c.h.b16 %v156
    %v513 = vunpack.c.l.b16 %v157
    %v514 = vunpack.c.h.b16 %v157
    %v515 = vunpack.c.l.b16 %v158
    %v516 = vunpack.c.h.b16 %v158
    %v517 = vunpack.c.l.b16 %v159
    %v518 = vunpack.c.h.b16 %v159
    %v519 = vunpack.c.l.b16 %v160
    %v520 = vunpack.c.h.b16 %v160
    %v521 = vunpack.c.l.b16 %v161
    %v522 = vunpack.c.h.b16 %v161
    %v523 = vpack.c.b16 %v301, %v299
    %v524 = vpack.c.b16 %v302, %v300
    %v525 = vpack.c.b16 %v305, %v303
    %v526 = vpack.c.b16 %v306, %v304
    %v527 = vpack.c.b16 %v309, %v307
    %v528 = vpack.c.b16 %v310, %v308
    %v529 = vpack.c.b16 %v313, %v311
    %v530 = vpack.c.b16 %v314, %v312
    %v531 = vpack.c.b16 %v317, %v315
    %v532 = vpack.c.b16 %v318, %v316
    %v533 = vpack.c.b16 %v321, %v319
    %v534 = vpack.c.b16 %v322, %v320
    %v535 = vpack.c.b16 %v325, %v323
    %v536 = vpack.c.b16 %v326, %v324
    %v537 = vpack.c.b16 %v329, %v327
    %v538 = vpack.c.b16 %v330, %v328
    %v539 = vpack.c.b16 %v333, %v331
    %v540 = vpack.c.b16 %v334, %v332
    %v541 = vpack.c.b16 %v337, %v335
    %v542 = vpack.c.b16 %v338, %v336
    %v543 = vpack.c.b16 %v341, %v339
    %v544 = vpack.c.b16 %v342, %v340
    %v545 = vpack.c.b16 %v345, %v343
    %v546 = vpack.c.b16 %v346, %v344
    %v547 = vpack.c.b16 %v349, %v347
    %v548 = vpack.c.b16 %v350, %v348
    %v549 = vpack.c.b16 %v353, %v351
    %v550 = vpack.c.b16 %v354, %v352
    %v551 = vpack.c.b16 %v357, %v355
    %v552 = vpack.c.b16 %v358, %v356
    %v553 = vpack.c.b16 %v361, %v359
    %v554 = vpack.c.b16 %v362, %v360
    %v555 = vpack.c.b16 %v365, %v363
    %v556 = vpack.c.b16 %v366, %v364
    %v557 = vpack.c.b16 %v369, %v367
    %v558 = vpack.c.b16 %v370, %v368
    %v559 = vpack.c.b16 %v373, %v371
    %v560 = vpack.c.b16 %v374, %v372
    %v561 = vpack.c.b16 %v377, %v375
    %v562 = vpack.c.b16 %v378, %v376
    %v563 = vpack.c.b16 %v381, %v379
    %v564 = vpack.c.b16 %v382, %v380
    %v565 = vpack.c.b16 %v385, %v383
    %v566 = vpack.c.b16 %v386, %v384
    %v567 = vpack.c.b16 %v389, %v387
    %v568 = vpack.c.b16 %v390, %v388
    %v569 = vpack.c.b16 %v393, %v391
    %v570 = vpack.c.b16 %v394, %v392
    %v571 = vpack.c.b16 %v397, %v395
    %v572 = vpack.c.b16 %v398, %v396
    %v573 = vpack.c.b16 %v401, %v399
    %v574 = vpack.c.b16 %v402, %v400
    %v575 = vpack.c.b16 %v405, %v403
    %v576 = vpack.c.b16 %v406, %v404
    %v577 = vpack.c.b16 %v409, %v407
    %v578 = vpack.c.b16 %v410, %v408
    %v579 = vpack.c.b16 %v413, %v411
    %v580 = vpack.c.b16 %v414, %v412
    %v581 = vpack.c.b16 %v417, %v415
    %v582 = vpack.c.b16 %v418, %v416
    %v583 = vpack.c.b16 %v421, %v419
    %v584 = vpack.c.b16 %v422, %v420
    %v585 = vpack.c.b16 %v425, %v423
    %v586 = vpack.c.b16 %v426, %v424
    %v587 = vpack.c.b16 %v429, %v427
    %v588 = vpack.c.b16 %v430, %v428
    %v589 = vpack.c.b16 %v433, %v431
    %v590 = vpack.c.b16 %v434, %v432
    %v591 = vpack.c.b16 %v437, %v435
    %v592 = vpack.c.b16 %v438, %v436
    %v593 = vpack.c.b16 %v441, %v439
    %v594 = vpack.c.b16 %v442, %v440
    %v595 = vpack.c.b16 %v445, %v443
    %v596 = vpack.c.b16 %v446, %v444
    %v597 = vpack.c.b16 %v449, %v447
    %v598 = vpack.c.b16 %v450, %v448
    %v599 = vpack.c.b16 %v453, %v451
    %v600 = vpack.c.b16 %v454, %v452
    %v601 = vpack.c.b16 %v457, %v455
    %v602 = vpack.c.b16 %v458, %v456
    %v603 = vpack.c.b16 %v461, %v459
    %v604 = vpack.c.b16 %v462, %v460
    %v605 = vpack.c.b16 %v465, %v463
    %v606 = vpack.c.b16 %v466, %v464
    %v607 = vpack.c.b16 %v469, %v467
    %v608 = vpack.c.b16 %v470, %v468
    %v609 = vpack.c.b16 %v473, %v471
    %v610 = vpack.c.b16 %v474, %v472
    %v611 = vpack.c.b16 %v477, %v475
    %v612 = vpack.c.b16 %v478, %v476
    %v613 = vpack.c.b16 %v481, %v479
    %v614 = vpack.c.b16 %v482, %v480
    %v615 = vpack.c.b16 %v485, %v483
    %v616 = vpack.c.b16 %v486, %v484
    %v617 = vpack.c.b16 %v489, %v487
    %v618 = vpack.c.b16 %v490, %v488
    %v619 = vpack.c.b16 %v493, %v491
    %v620 = vpack.c.b16 %v494, %v492
    %v621 = vpack.c.b16 %v497, %v495
    %v622 = vpack.c.b16 %v498, %v496
    %v623 = vpack.c.b16 %v501, %v499
    %v624 = vpack.c.b16 %v502, %v500
    %v625 = vpack.c.b16 %v505, %v503
    %v626 = vpack.c.b16 %v506, %v504
    %v627 = vpack.c.b16 %v509, %v507
    %v628 = vpack.c.b16 %v510, %v508
    %v629 = vpack.c.b16 %v513, %v511
    %v630 = vpack.c.b16 %v514, %v512
    %v631 = vpack.c.b16 %v517, %v515
    %v632 = vpack.c.b16 %v518, %v516
    %v633 = vpack.c.b16 %v521, %v519
    %v634 = vpack.c.b16 %v522, %v520
    %747 = vmatprep.subr.bf16.mxu0 %v538
    %748 = vmatpush1.bf16.msra.mxu0 %v537
    %749 = vmatprep.subr.bf16.mxu0 %v536
    %750 = vmatpush1.bf16.msra.mxu0 %v535
    %751 = vmatprep.subr.bf16.mxu0 %v534
    %752 = vmatpush1.bf16.msra.mxu0 %v533
    %753 = vmatprep.subr.bf16.mxu0 %v532
    %754 = vmatpush1.bf16.msra.mxu0 %v531
    %755 = vmatprep.subr.bf16.mxu0 %v530
    %756 = vmatpush1.bf16.msra.mxu0 %v529
    %757 = vmatprep.subr.bf16.mxu0 %v528
    %758 = vmatpush1.bf16.msra.mxu0 %v527
    %759 = vmatprep.subr.bf16.mxu0 %v526
    %760 = vmatpush1.bf16.msra.mxu0 %v525
    %761 = vmatprep.subr.bf16.mxu0 %v524
    %762 = vmatpush1.bf16.msra.mxu0 %v523
    %763 = vmatprep.subr.bf16.mxu0 %v554
    %764 = vmatpush2.bf16.msra.mxu0 %v553
    %765 = vmatprep.subr.bf16.mxu0 %v552
    %766 = vmatpush2.bf16.msra.mxu0 %v551
    %767 = vmatprep.subr.bf16.mxu0 %v550
    %768 = vmatpush2.bf16.msra.mxu0 %v549
    %769 = vmatprep.subr.bf16.mxu0 %v548
    %770 = vmatpush2.bf16.msra.mxu0 %v547
    %771 = vmatprep.subr.bf16.mxu0 %v546
    %772 = vmatpush2.bf16.msra.mxu0 %v545
    %773 = vmatprep.subr.bf16.mxu0 %v544
    %774 = vmatpush2.bf16.msra.mxu0 %v543
    %775 = vmatprep.subr.bf16.mxu0 %v542
    %776 = vmatpush2.bf16.msra.mxu0 %v541
    %777 = vmatprep.subr.bf16.mxu0 %v540
    %778 = vmatpush2.bf16.msra.mxu0 %v539
    %779 = vmatprep.mubr.bf16.mxu0 %v174
    %780 = vmatmul.mubr.bf16.gmra.mxu0 %v173
    %v781 = vpop.f32.mrf.mxu0
    %v782 = vadd.f32 0.0, %v781
    %v783 = vpop.f32.mrf.mxu0
    %v784 = vadd.f32 0.0, %v783
    %v785 = vpop.f32.mrf.mxu0
    %v786 = vpop.f32.mrf.mxu0
    %787 = vdwg.mxu0
    %788 = vmatprep.subr.bf16.mxu0 %v570
    %789 = vmatpush1.bf16.msra.mxu0 %v569
    %790 = vmatprep.subr.bf16.mxu0 %v568
    %791 = vmatpush1.bf16.msra.mxu0 %v567
    %792 = vmatprep.subr.bf16.mxu0 %v566
    %793 = vmatpush1.bf16.msra.mxu0 %v565
    %794 = vmatprep.subr.bf16.mxu0 %v564
    %795 = vmatpush1.bf16.msra.mxu0 %v563
    %796 = vmatprep.subr.bf16.mxu0 %v562
    %797 = vmatpush1.bf16.msra.mxu0 %v561
    %798 = vmatprep.subr.bf16.mxu0 %v560
    %799 = vmatpush1.bf16.msra.mxu0 %v559
    %800 = vmatprep.subr.bf16.mxu0 %v558
    %801 = vmatpush1.bf16.msra.mxu0 %v557
    %802 = vmatprep.subr.bf16.mxu0 %v556
    %803 = vmatpush1.bf16.msra.mxu0 %v555
    %804 = vmatprep.subr.bf16.mxu0 %v586
    %805 = vmatpush2.bf16.msra.mxu0 %v585
    %806 = vmatprep.subr.bf16.mxu0 %v584
    %807 = vmatpush2.bf16.msra.mxu0 %v583
    %808 = vmatprep.subr.bf16.mxu0 %v582
    %809 = vmatpush2.bf16.msra.mxu0 %v581
    %810 = vmatprep.subr.bf16.mxu0 %v580
    %811 = vmatpush2.bf16.msra.mxu0 %v579
    %812 = vmatprep.subr.bf16.mxu0 %v578
    %813 = vmatpush2.bf16.msra.mxu0 %v577
    %814 = vmatprep.subr.bf16.mxu0 %v576
    %815 = vmatpush2.bf16.msra.mxu0 %v575
    %816 = vmatprep.subr.bf16.mxu0 %v574
    %817 = vmatpush2.bf16.msra.mxu0 %v573
    %818 = vmatprep.subr.bf16.mxu0 %v572
    %819 = vmatpush2.bf16.msra.mxu0 %v571
    %820 = vmatprep.mubr.bf16.mxu0 %v176
    %821 = vmatmul.mubr.bf16.gmra.mxu0 %v175
    %v822 = vpop.f32.mrf.mxu0
    %v823 = vadd.f32 %v782, %v822
    %v824 = vpop.f32.mrf.mxu0
    %v825 = vadd.f32 %v784, %v824
    %v826 = vpop.f32.mrf.mxu0
    %v827 = vpop.f32.mrf.mxu0
    %828 = vdwg.mxu0
    %829 = vmatprep.subr.bf16.mxu0 %v602
    %830 = vmatpush1.bf16.msra.mxu0 %v601
    %831 = vmatprep.subr.bf16.mxu0 %v600
    %832 = vmatpush1.bf16.msra.mxu0 %v599
    %833 = vmatprep.subr.bf16.mxu0 %v598
    %834 = vmatpush1.bf16.msra.mxu0 %v597
    %835 = vmatprep.subr.bf16.mxu0 %v596
    %836 = vmatpush1.bf16.msra.mxu0 %v595
    %837 = vmatprep.subr.bf16.mxu0 %v594
    %838 = vmatpush1.bf16.msra.mxu0 %v593
    %839 = vmatprep.subr.bf16.mxu0 %v592
    %840 = vmatpush1.bf16.msra.mxu0 %v591
    %841 = vmatprep.subr.bf16.mxu0 %v590
    %842 = vmatpush1.bf16.msra.mxu0 %v589
    %843 = vmatprep.subr.bf16.mxu0 %v588
    %844 = vmatpush1.bf16.msra.mxu0 %v587
    %845 = vmatprep.subr.bf16.mxu0 %v618
    %846 = vmatpush2.bf16.msra.mxu0 %v617
    %847 = vmatprep.subr.bf16.mxu0 %v616
    %848 = vmatpush2.bf16.msra.mxu0 %v615
    %849 = vmatprep.subr.bf16.mxu0 %v614
    %850 = vmatpush2.bf16.msra.mxu0 %v613
    %851 = vmatprep.subr.bf16.mxu0 %v612
    %852 = vmatpush2.bf16.msra.mxu0 %v611
    %853 = vmatprep.subr.bf16.mxu0 %v610
    %854 = vmatpush2.bf16.msra.mxu0 %v609
    %855 = vmatprep.subr.bf16.mxu0 %v608
    %856 = vmatpush2.bf16.msra.mxu0 %v607
    %857 = vmatprep.subr.bf16.mxu0 %v606
    %858 = vmatpush2.bf16.msra.mxu0 %v605
    %859 = vmatprep.subr.bf16.mxu0 %v604
    %860 = vmatpush2.bf16.msra.mxu0 %v603
    %861 = vmatprep.mubr.bf16.mxu0 %v178
    %862 = vmatmul.mubr.bf16.gmra.mxu0 %v177
    %v863 = vpop.f32.mrf.mxu0
    %v864 = vadd.f32 %v823, %v863
    %v865 = vpop.f32.mrf.mxu0
    %v866 = vadd.f32 %v825, %v865
    %v867 = vpop.f32.mrf.mxu0
    %v868 = vpop.f32.mrf.mxu0
    %869 = vdwg.mxu0
    %870 = vmatprep.subr.bf16.mxu0 %v634
    %871 = vmatpush1.bf16.msra.mxu0 %v633
    %872 = vmatprep.subr.bf16.mxu0 %v632
    %873 = vmatpush1.bf16.msra.mxu0 %v631
    %874 = vmatprep.subr.bf16.mxu0 %v630
    %875 = vmatpush1.bf16.msra.mxu0 %v629
    %876 = vmatprep.subr.bf16.mxu0 %v628
    %877 = vmatpush1.bf16.msra.mxu0 %v627
    %878 = vmatprep.subr.bf16.mxu0 %v626
    %879 = vmatpush1.bf16.msra.mxu0 %v625
    %880 = vmatprep.subr.bf16.mxu0 %v624
    %881 = vmatpush1.bf16.msra.mxu0 %v623
    %882 = vmatprep.subr.bf16.mxu0 %v622
    %883 = vmatpush1.bf16.msra.mxu0 %v621
    %884 = vmatprep.subr.bf16.mxu0 %v620
    %885 = vmatpush1.bf16.msra.mxu0 %v619
    %886 = vmatprep.subr.bf16.mxu0 0
    %887 = vmatpush2.bf16.msra.mxu0 0
    %888 = vmatprep.subr.bf16.mxu0 0
    %889 = vmatpush2.bf16.msra.mxu0 0
    %890 = vmatprep.subr.bf16.mxu0 0
    %891 = vmatpush2.bf16.msra.mxu0 0
    %892 = vmatprep.subr.bf16.mxu0 0
    %893 = vmatpush2.bf16.msra.mxu0 0
    %894 = vmatprep.subr.bf16.mxu0 0
    %895 = vmatpush2.bf16.msra.mxu0 0
    %896 = vmatprep.subr.bf16.mxu0 0
    %897 = vmatpush2.bf16.msra.mxu0 0
    %898 = vmatprep.subr.bf16.mxu0 0
    %899 = vmatpush2.bf16.msra.mxu0 0
    %900 = vmatprep.subr.bf16.mxu0 0
    %901 = vmatpush2.bf16.msra.mxu0 0
    %902 = vmatprep.mubr.bf16.mxu0 0
    %903 = vmatmul.mubr.bf16.gmra.mxu0 %v179
    %v904 = vpop.f32.mrf.mxu0
    %v905 = vadd.f32 %v864, %v904
    %v906 = vpop.f32.mrf.mxu0
    %v907 = vadd.f32 %v866, %v906
    %v908 = vpop.f32.mrf.mxu0
    %v909 = vpop.f32.mrf.mxu0
    %910 = vdwg.mxu0
    %v911 = vmax.f32 %v905, 0.0
    %v912 = vmax.f32 %v907, 0.0
    %v913 = vpack.c.bf16 %v911, %v911
    %v914 = vpack.c.bf16 %v912, %v912
    %v915 = vld [vmem:[%s2] sm:$0xf]
    %v916 = vld [vmem:[%s2 + $0x4] sm:$0xf]
    %v917 = vld [vmem:[%s2 + $0x8] sm:$0xf]
    %v918 = vld [vmem:[%s2 + $0xc] sm:$0xf]
    %v919 = vld [vmem:[%s2 + $0x10] sm:$0xf]
    %v920 = vld [vmem:[%s2 + $0x14] sm:$0xf]
    %v921 = vld [vmem:[%s2 + $0x18] sm:$0xf]
    %v922 = vld [vmem:[%s2 + $0x1c] sm:$0xf]
    %v923 = vld [vmem:[%s2 + $0x20] sm:$0xf]
    %v924 = vld [vmem:[%s2 + $0x24] sm:$0xf]
    %v925 = vld [vmem:[%s2 + $0x28] sm:$0xf]
    %v926 = vld [vmem:[%s2 + $0x2c] sm:$0xf]
    %v927 = vld [vmem:[%s2 + $0x30] sm:$0xf]
    %v928 = vld [vmem:[%s2 + $0x34] sm:$0xf]
    %v929 = vld [vmem:[%s2 + $0x38] sm:$0xf]
    %v930 = vld [vmem:[%s2 + $0x3c] sm:$0xf]
    %v931 = vld [vmem:[%s2 + $0x40] sm:$0xf]
    %v932 = vld [vmem:[%s2 + $0x44] sm:$0xf]
    %v933 = vld [vmem:[%s2 + $0x48] sm:$0xf]
    %v934 = vld [vmem:[%s2 + $0x4c] sm:$0xf]
    %v935 = vld [vmem:[%s2 + $0x50] sm:$0xf]
    %v936 = vld [vmem:[%s2 + $0x54] sm:$0xf]
    %v937 = vld [vmem:[%s2 + $0x58] sm:$0xf]
    %v938 = vld [vmem:[%s2 + $0x5c] sm:$0xf]
    %v939 = vld [vmem:[%s2 + $0x60] sm:$0xf]
    %v940 = vld [vmem:[%s2 + $0x64] sm:$0xf]
    %v941 = vld [vmem:[%s2 + $0x68] sm:$0xf]
    %v942 = vld [vmem:[%s2 + $0x6c] sm:$0xf]
    %v943 = vld [vmem:[%s2 + $0x70] sm:$0xf]
    %v944 = vld [vmem:[%s2 + $0x74] sm:$0xf]
    %v945 = vld [vmem:[%s2 + $0x78] sm:$0xf]
    %v946 = vld [vmem:[%s2 + $0x7c] sm:$0xf]
    %v979 = vunpack.c.l.b16 %v915
    %v980 = vunpack.c.l.b16 %v916
    %v981 = vunpack.c.l.b16 %v917
    %v982 = vunpack.c.l.b16 %v918
    %v983 = vunpack.c.l.b16 %v919
    %v984 = vunpack.c.l.b16 %v920
    %v985 = vunpack.c.l.b16 %v921
    %v986 = vunpack.c.l.b16 %v922
    %v987 = vunpack.c.l.b16 %v923
    %v988 = vunpack.c.l.b16 %v924
    %v989 = vunpack.c.l.b16 %v925
    %v990 = vunpack.c.l.b16 %v926
    %v991 = vunpack.c.l.b16 %v927
    %v992 = vunpack.c.l.b16 %v928
    %v993 = vunpack.c.l.b16 %v929
    %v994 = vunpack.c.l.b16 %v930
    %v995 = vunpack.c.l.b16 %v931
    %v996 = vunpack.c.l.b16 %v932
    %v997 = vunpack.c.l.b16 %v933
    %v998 = vunpack.c.l.b16 %v934
    %v999 = vunpack.c.l.b16 %v935
    %v1000 = vunpack.c.l.b16 %v936
    %v1001 = vunpack.c.l.b16 %v937
    %v1002 = vunpack.c.l.b16 %v938
    %v1003 = vunpack.c.l.b16 %v939
    %v1004 = vunpack.c.l.b16 %v940
    %v1005 = vunpack.c.l.b16 %v941
    %v1006 = vunpack.c.l.b16 %v942
    %v1007 = vunpack.c.l.b16 %v943
    %v1008 = vunpack.c.l.b16 %v944
    %v1009 = vunpack.c.l.b16 %v945
    %v1010 = vunpack.c.l.b16 %v946
    %v1011 = vpack.c.b16 %v980, %v979
    %v1012 = vpack.c.b16 %v982, %v981
    %v1013 = vpack.c.b16 %v984, %v983
    %v1014 = vpack.c.b16 %v986, %v985
    %v1015 = vpack.c.b16 %v988, %v987
    %v1016 = vpack.c.b16 %v990, %v989
    %v1017 = vpack.c.b16 %v992, %v991
    %v1018 = vpack.c.b16 %v994, %v993
    %v1019 = vpack.c.b16 %v996, %v995
    %v1020 = vpack.c.b16 %v998, %v997
    %v1021 = vpack.c.b16 %v1000, %v999
    %v1022 = vpack.c.b16 %v1002, %v1001
    %v1023 = vpack.c.b16 %v1004, %v1003
    %v1024 = vpack.c.b16 %v1006, %v1005
    %v1025 = vpack.c.b16 %v1008, %v1007
    %v1026 = vpack.c.b16 %v1010, %v1009
    %1043 = vmatprep.subr.bf16.mxu0 0
    %1044 = vmatpush1.bf16.msra.mxu0 %v1018
    %1045 = vmatprep.subr.bf16.mxu0 0
    %1046 = vmatpush1.bf16.msra.mxu0 %v1017
    %1047 = vmatprep.subr.bf16.mxu0 0
    %1048 = vmatpush1.bf16.msra.mxu0 %v1016
    %1049 = vmatprep.subr.bf16.mxu0 0
    %1050 = vmatpush1.bf16.msra.mxu0 %v1015
    %1051 = vmatprep.subr.bf16.mxu0 0
    %1052 = vmatpush1.bf16.msra.mxu0 %v1014
    %1053 = vmatprep.subr.bf16.mxu0 0
    %1054 = vmatpush1.bf16.msra.mxu0 %v1013
    %1055 = vmatprep.subr.bf16.mxu0 0
    %1056 = vmatpush1.bf16.msra.mxu0 %v1012
    %1057 = vmatprep.subr.bf16.mxu0 0
    %1058 = vmatpush1.bf16.msra.mxu0 %v1011
    %1059 = vmatprep.subr.bf16.mxu0 0
    %1060 = vmatpush2.bf16.msra.mxu0 %v1026
    %1061 = vmatprep.subr.bf16.mxu0 0
    %1062 = vmatpush2.bf16.msra.mxu0 %v1025
    %1063 = vmatprep.subr.bf16.mxu0 0
    %1064 = vmatpush2.bf16.msra.mxu0 %v1024
    %1065 = vmatprep.subr.bf16.mxu0 0
    %1066 = vmatpush2.bf16.msra.mxu0 %v1023
    %1067 = vmatprep.subr.bf16.mxu0 0
    %1068 = vmatpush2.bf16.msra.mxu0 %v1022
    %1069 = vmatprep.subr.bf16.mxu0 0
    %1070 = vmatpush2.bf16.msra.mxu0 %v1021
    %1071 = vmatprep.subr.bf16.mxu0 0
    %1072 = vmatpush2.bf16.msra.mxu0 %v1020
    %1073 = vmatprep.subr.bf16.mxu0 0
    %1074 = vmatpush2.bf16.msra.mxu0 %v1019
    %1075 = vmatprep.mubr.bf16.mxu0 %v914
    %1076 = vmatmul.mubr.bf16.gmra.mxu0 %v913
    %v1077 = vpop.f32.mrf.mxu0
    %v1078 = vadd.f32 0.0, %v1077
    %v1079 = vpop.f32.mrf.mxu0
    %v1080 = vpop.f32.mrf.mxu0
    %v1081 = vpop.f32.mrf.mxu0
    %1082 = vdwg.mxu0
    %v1083 = vmax.f32 %v1078, 0.0
    %v1084 = vpack.c.bf16 %v1083, %v1083
    %v1085 = vld [vmem:[#allocation4] sm:$0xf]
    %v1086 = vld [vmem:[#allocation4 + $0x4] sm:$0xf]
    %v1087 = vld [vmem:[#allocation4 + $0x8] sm:$0xf]
    %v1088 = vld [vmem:[#allocation4 + $0xc] sm:$0xf]
    %v1089 = vld [vmem:[#allocation4 + $0x10] sm:$0xf]
    %v1090 = vld [vmem:[#allocation4 + $0x14] sm:$0xf]
    %v1091 = vld [vmem:[#allocation4 + $0x18] sm:$0xf]
    %v1092 = vld [vmem:[#allocation4 + $0x1c] sm:$0xf]
    %v1093 = vld [vmem:[#allocation4 + $0x20] sm:$0xf]
    %v1094 = vld [vmem:[#allocation4 + $0x24] sm:$0xf]
    %v1095 = vld [vmem:[#allocation4 + $0x28] sm:$0xf]
    %v1096 = vld [vmem:[#allocation4 + $0x2c] sm:$0xf]
    %v1097 = vld [vmem:[#allocation4 + $0x30] sm:$0xf]
    %v1098 = vld [vmem:[#allocation4 + $0x34] sm:$0xf]
    %v1099 = vld [vmem:[#allocation4 + $0x38] sm:$0xf]
    %v1100 = vld [vmem:[#allocation4 + $0x3c] sm:$0xf]
    %v1117 = vunpack.c.l.b16 %v1085
    %v1118 = vunpack.c.l.b16 %v1086
    %v1119 = vunpack.c.l.b16 %v1087
    %v1120 = vunpack.c.l.b16 %v1088
    %v1121 = vunpack.c.l.b16 %v1089
    %v1122 = vunpack.c.l.b16 %v1090
    %v1123 = vunpack.c.l.b16 %v1091
    %v1124 = vunpack.c.l.b16 %v1092
    %v1125 = vunpack.c.l.b16 %v1093
    %v1126 = vunpack.c.l.b16 %v1094
    %v1127 = vunpack.c.l.b16 %v1095
    %v1128 = vunpack.c.l.b16 %v1096
    %v1129 = vunpack.c.l.b16 %v1097
    %v1130 = vunpack.c.l.b16 %v1098
    %v1131 = vunpack.c.l.b16 %v1099
    %v1132 = vunpack.c.l.b16 %v1100
    %v1133 = vpack.c.b16 %v1118, %v1117
    %v1134 = vpack.c.b16 %v1120, %v1119
    %v1135 = vpack.c.b16 %v1122, %v1121
    %v1136 = vpack.c.b16 %v1124, %v1123
    %v1137 = vpack.c.b16 %v1126, %v1125
    %v1138 = vpack.c.b16 %v1128, %v1127
    %v1139 = vpack.c.b16 %v1130, %v1129
    %v1140 = vpack.c.b16 %v1132, %v1131
    %1149 = vmatprep.subr.bf16.mxu0 0
    %1150 = vmatpush1.bf16.msra.mxu0 %v1140
    %1151 = vmatprep.subr.bf16.mxu0 0
    %1152 = vmatpush1.bf16.msra.mxu0 %v1139
    %1153 = vmatprep.subr.bf16.mxu0 0
    %1154 = vmatpush1.bf16.msra.mxu0 %v1138
    %1155 = vmatprep.subr.bf16.mxu0 0
    %1156 = vmatpush1.bf16.msra.mxu0 %v1137
    %1157 = vmatprep.subr.bf16.mxu0 0
    %1158 = vmatpush1.bf16.msra.mxu0 %v1136
    %1159 = vmatprep.subr.bf16.mxu0 0
    %1160 = vmatpush1.bf16.msra.mxu0 %v1135
    %1161 = vmatprep.subr.bf16.mxu0 0
    %1162 = vmatpush1.bf16.msra.mxu0 %v1134
    %1163 = vmatprep.subr.bf16.mxu0 0
    %1164 = vmatpush1.bf16.msra.mxu0 %v1133
    %1165 = vmatprep.subr.bf16.mxu0 0
    %1166 = vmatpush2.bf16.msra.mxu0 0
    %1167 = vmatprep.subr.bf16.mxu0 0
    %1168 = vmatpush2.bf16.msra.mxu0 0
    %1169 = vmatprep.subr.bf16.mxu0 0
    %1170 = vmatpush2.bf16.msra.mxu0 0
    %1171 = vmatprep.subr.bf16.mxu0 0
    %1172 = vmatpush2.bf16.msra.mxu0 0
    %1173 = vmatprep.subr.bf16.mxu0 0
    %1174 = vmatpush2.bf16.msra.mxu0 0
    %1175 = vmatprep.subr.bf16.mxu0 0
    %1176 = vmatpush2.bf16.msra.mxu0 0
    %1177 = vmatprep.subr.bf16.mxu0 0
    %1178 = vmatpush2.bf16.msra.mxu0 0
    %1179 = vmatprep.subr.bf16.mxu0 0
    %1180 = vmatpush2.bf16.msra.mxu0 0
    %1181 = vmatprep.mubr.bf16.mxu0 0
    %1182 = vmatmul.mubr.bf16.gmra.mxu0 %v1084
    %v1183 = vpop.f32.mrf.mxu0
    %v1184 = vadd.f32 0.0, %v1183
    %v1185 = vpop.f32.mrf.mxu0
    %v1186 = vpop.f32.mrf.mxu0
    %v1187 = vpop.f32.mrf.mxu0
    %1188 = vdwg.mxu0
    %1189 = vst [vmem:[%s4] sm:$0xff] %v1184
    // Predicated region
    $region26: #{fcnet_forward.1} parent=1 // pred_check
      _
    $region27: #{fcnet_forward.1} parent=1 // pred_check_branch
      %1191 = sbr.rel (0) target = $region29
    $region28: #{fcnet_forward.1} parent=1 // pred_region
      _
    $region29: #{fcnet_forward.1} parent=1 // pred_fallthru
      _
    // Predicated region
    $region30: #{fcnet_forward.1} parent=1 // pred_check
      _
    $region31: #{fcnet_forward.1} parent=1 // pred_check_branch
      %1193 = sbr.rel (0) target = $region33
    $region32: #{fcnet_forward.1} parent=1 // pred_region
      _
    $region33: #{fcnet_forward.1} parent=1 // pred_fallthru
      _
    %1194 = vsyncpa [#allocation3], 1
    %1195 = vsyncpa [#allocation5], 1

</llo_original>
